<compile_context>
chip_gen: v6e
topology: v6e:2x2x1
jax: 0.10.0
libtpu: 0.0.40
codegen_flags: <defaults>
</compile_context>

<pallas_src>
import jax
import jax.numpy as jnp
from jax.experimental import pallas as pl
from jax.experimental.pallas import tpu as pltpu


def _round_up(x, m):
    return (x + m - 1) // m * m


# ---------------------------------------------------------------------------
# Kernels
# ---------------------------------------------------------------------------

def _linear_kernel_single_k(x_ref, w_ref, b_ref, o_ref):
    """Single K step: no accumulator scratch, no branches."""
    x = x_ref[...].astype(w_ref.dtype)          # in-kernel cast (saves an x HBM pass)
    acc = jnp.dot(x, w_ref[...], preferred_element_type=jnp.float32)
    o_ref[...] = (acc + b_ref[...]).astype(o_ref.dtype)


def _linear_kernel_multi_k(x_ref, w_ref, b_ref, o_ref, acc_ref):
    """K reduction on grid axis 2 with an f32 VMEM accumulator."""
    k = pl.program_id(2)

    @pl.when(k == 0)
    def _init():
        acc_ref[...] = jnp.zeros_like(acc_ref)

    x = x_ref[...].astype(w_ref.dtype)
    acc_ref[...] += jnp.dot(x, w_ref[...], preferred_element_type=jnp.float32)

    @pl.when(k == pl.num_programs(2) - 1)
    def _finalize():
        o_ref[...] = (acc_ref[...] + b_ref[...]).astype(o_ref.dtype)


# ---------------------------------------------------------------------------
# Parameter prep (one-time, NOT in the per-call hot path)
# ---------------------------------------------------------------------------

def prepare_linear_params(weight, bias, *, compute_dtype=jnp.bfloat16):
    """weight: [D_out, D_in] (PyTorch layout), bias: [D_out].

    Stores the weight pre-transposed as [Kp, Np] in the MXU compute dtype and the
    bias as an f32 [1, Np] row, both zero-padded to lane-dense 128 multiples.
    Tile sizes are chosen per call (they depend on B and the chip's VMEM)."""
    D_out, D_in = weight.shape
    Kp = _round_up(D_in, 128)
    Np = _round_up(D_out, 128)
    w_t = jnp.pad(weight.T, ((0, Kp - D_in), (0, Np - D_out))).astype(compute_dtype)
    b2d = jnp.pad(bias.reshape(1, -1), ((0, 0), (0, Np - D_out))).astype(jnp.float32)
    return dict(w_t=w_t, b2d=b2d, d_in=D_in, d_out=D_out, compute_dtype=compute_dtype)


# ---------------------------------------------------------------------------
# Tile planning
# ---------------------------------------------------------------------------

def _vmem_budget():
    """(working-set budget, physical VMEM capacity) in bytes for this chip."""
    cap = 64 << 20                      # conservative default: v7x per-TensorCore VMEM
    try:
        info = pltpu.get_tpu_info()
        v = getattr(info, "vmem_capacity_bytes", None)
        if v:
            cap = int(v)
    except Exception:
        pass
    # ~40% of physical for the double-buffered working set leaves headroom for
    # compiler-internal scratch / semaphores on every generation (v7x included).
    return int(cap * 0.40), cap


def _largest_divisor_tile(total, cap, align=128):
    """Largest t <= cap that divides `total` and is a multiple of `align`.
    `total` is guaranteed to be a multiple of `align`."""
    cap = max(align, min(cap, total))
    best = align
    t = align
    while t <= cap:
        if total % t == 0:
            best = t
        t += align
    return best


def _plan_tiles(B, Kp, Np, x_item, out_item, budget, tn_cap, tk_cap):
    m_align = 16                        # bf16 sublane packing: (16, 128) native tiles
    tn_cap = max(128, tn_cap)
    tk_cap = max(128, tk_cap)

    while True:
        tn = _largest_divisor_tile(Np, tn_cap)
        tk = _largest_divisor_tile(Kp, tk_cap)
        kt = Kp // tk
        # Working-set bytes: fixed (tm-independent) + per-M-row.
        fixed = 2 * tk * tn * 2 + 2 * tn * 4          # 2x W^T tiles (bf16) + 2x bias rows
        per_m = 2 * tk * x_item + 2 * tn * out_item   # 2x x tiles + 2x out tiles
        if kt > 1:
            per_m += tn * 4                           # f32 accumulator
        avail = budget - fixed
        if avail >= m_align * per_m or (tk_cap <= 128 and tn_cap <= 128):
            break
        if tk_cap > 128:
            tk_cap //= 2
        elif tn_cap > 128:
            tn_cap //= 2

    tm_fit = max(m_align, (max(avail, 0) // per_m) // m_align * m_align)

    # Full-batch M tile when it fits (W streamed exactly once); otherwise pick the
    # smallest tile count and a tile size so that row padding stays < one tile.
    B_up = _round_up(B, m_align)
    if B_up <= tm_fit:
        tm, mt = B_up, 1
    else:
        mt = -(-B // tm_fit)
        tm = _round_up(-(-B // mt), m_align)
        while tm > tm_fit:
            mt += 1
            tm = _round_up(-(-B // mt), m_align)
    Mp = tm * mt
    nt = Np // tn

    # Guarantee >= 2 parallel grid points so v7x's second TensorCore has work.
    # Split N (keeps "W streamed once"); never split M for this.
    if mt * nt == 1 and Np % 256 == 0:
        tn = Np // 2
        nt = 2

    return tm, tn, tk, mt, nt, kt, Mp


# ---------------------------------------------------------------------------
# Forward
# ---------------------------------------------------------------------------

def linear_encoder_forward(x, params, *, out_dtype=None, tn_cap=512, tk_cap=2048):
    """x: [B, D_in] -> [B, D_out].  `params` comes from prepare_linear_params.

    Pass out_dtype=jnp.bfloat16 when the downstream consumer accepts it to halve
    output writeback traffic; the default keeps nn.Linear's input-dtype output."""
    B, D_in = x.shape
    assert D_in == params["d_in"], "input feature dim mismatch"
    w_t, b2d = params["w_t"], params["b2d"]
    Kp, Np = w_t.shape
    D_out = params["d_out"]
    out_dtype = jnp.dtype(out_dtype or x.dtype)
    x_item = jnp.dtype(x.dtype).itemsize
    out_item = out_dtype.itemsize

    budget, vmem_cap = _vmem_budget()
    tm, tn, tk, mt, nt, kt, Mp = _plan_tiles(B, Kp, Np, x_item, out_item,
                                             budget, tn_cap, tk_cap)

    # Pad rows/cols only when needed (fuses under jit); dtype cast happens in-kernel.
    x_p = x if (Mp, Kp) == (B, D_in) else jnp.pad(x, ((0, Mp - B), (0, Kp - D_in)))

    cost = pl.CostEstimate(
        flops=2 * Mp * Np * Kp,
        transcendentals=0,
        bytes_accessed=int(nt * Mp * Kp * x_item             # x re-read per N tile
                           + mt * Kp * Np * w_t.dtype.itemsize  # W re-read per M tile
                           + Np * 4                           # bias
                           + Mp * Np * out_item),             # output writeback
    )
    compiler_params = pltpu.CompilerParams(
        dimension_semantics=(("parallel", "parallel") if kt == 1
                             else ("parallel", "parallel", "arbitrary")),
        vmem_limit_bytes=int(min(vmem_cap * 3 // 4, 128 << 20)),
    )

    if kt == 1:
        grid_spec = pltpu.PrefetchScalarGridSpec(
            num_scalar_prefetch=0,
            grid=(mt, nt),
            in_specs=[
                pl.BlockSpec((tm, tk), lambda i, j: (i, 0)),   # x tile (full K)
                pl.BlockSpec((tk, tn), lambda i, j: (0, j)),   # W^T tile
                pl.BlockSpec((1, tn), lambda i, j: (0, j)),    # bias row
            ],
            out_specs=pl.BlockSpec((tm, tn), lambda i, j: (i, j)),
        )
        kernel = _linear_kernel_single_k
    else:
        grid_spec = pltpu.PrefetchScalarGridSpec(
            num_scalar_prefetch=0,
            grid=(mt, nt, kt),                                 # K (reduction) last
            in_specs=[
                pl.BlockSpec((tm, tk), lambda i, j, k: (i, k)),
                pl.BlockSpec((tk, tn), lambda i, j, k: (k, j)),
                pl.BlockSpec((1, tn), lambda i, j, k: (0, j)),
            ],
            out_specs=pl.BlockSpec((tm, tn), lambda i, j, k: (i, j)),
            scratch_shapes=[pltpu.VMEM((tm, tn), jnp.float32)],
        )
        kernel = _linear_kernel_multi_k

    out = pl.pallas_call(
        kernel,
        out_shape=jax.ShapeDtypeStruct((Mp, Np), out_dtype),
        grid_spec=grid_spec,
        compiler_params=compiler_params,
        cost_estimate=cost,
    )(x_p, w_t, b2d)

    if (Mp, Np) != (B, D_out):
        out = out[:B, :D_out]
    return out


# ---------------------------------------------------------------------------
# Demo / self-test
# ---------------------------------------------------------------------------

if __name__ == "__main__":
    # Small shapes consistent with the module, chosen to exercise both the
    # single-K fast path (with the v7x N-split -> 2 parallel grid points) and,
    # via forced small tile caps, the multi-K accumulator path.
    B, D_in, D_out = 32, 384, 256
    key = jax.random.PRNGKey(0)
    kx, kw, kb = jax.random.split(key, 3)

    x = jax.random.normal(kx, (B, D_in), dtype=jnp.float32)
    # Deterministic init mimicking nn.Linear's uniform(-1/sqrt(in), 1/sqrt(in)).
    bound = 1.0 / (D_in ** 0.5)
    weight = jax.random.uniform(kw, (D_out, D_in), minval=-bound, maxval=bound,
                                dtype=jnp.float32)
    bias = jax.random.uniform(kb, (D_out,), minval=-bound, maxval=bound,
                              dtype=jnp.float32)

    # One-time layout prep (transpose/pad/cast happen here, outside the hot path).
    params = prepare_linear_params(weight, bias)

    # Default plan: full-batch M tile, single K step, N split for 2 parallel points.
    fwd = jax.jit(lambda xx: linear_encoder_forward(xx, params))
    out = fwd(x)
    jax.block_until_ready(out)

    # Forced multi-K plan (small tk) to exercise the accumulator / pl.when path.
    fwd_multik = jax.jit(lambda xx: linear_encoder_forward(xx, params,
                                                           tn_cap=128, tk_cap=128))
    out2 = fwd_multik(x)
    jax.block_until_ready(out2)

    # Reference with matching bf16 MXU-input precision (f32 accumulate, f32 bias).
    # NOTE: results intentionally match bf16-input precision, not full-f32 nn.Linear.
    xb = x.astype(jnp.bfloat16).astype(jnp.float32)
    wb = weight.astype(jnp.bfloat16).astype(jnp.float32)
    ref = xb @ wb.T + bias

    assert out.shape == (B, D_out)
    assert out2.shape == (B, D_out)
    assert jnp.allclose(out, ref, atol=2e-3, rtol=2e-3), \
        float(jnp.max(jnp.abs(out - ref)))
    assert jnp.allclose(out2, ref, atol=2e-3, rtol=2e-3), \
        float(jnp.max(jnp.abs(out2 - ref)))

    print("KERNEL_OK")
</pallas_src>

<mosaic_0001>
module attributes {stable_mosaic.version = 11 : i64} {
  func.func @_linear_kernel_single_k(%arg0: i32, %arg1: i32, %arg2: memref<32x384xf32, #tpu.memory_space<vmem>>, %arg3: memref<384x128xbf16, #tpu.memory_space<vmem>>, %arg4: memref<1x128xf32, #tpu.memory_space<vmem>>, %arg5: memref<32x128xf32, #tpu.memory_space<vmem>>) attributes {dimension_semantics = [#tpu.dimension_semantics<parallel>, #tpu.dimension_semantics<parallel>], iteration_bounds = array<i64: 1, 2>, scalar_prefetch = 0 : i64, scratch_operands = 0 : i64, tpu.core_type = #tpu.core_type<tc>, window_params = [{transform_indices = @transform_0, window_bounds = array<i64: 32, 384>}, {transform_indices = @transform_1, window_bounds = array<i64: 384, 128>}, {transform_indices = @transform_2, window_bounds = array<i64: 1, 128>}, {transform_indices = @transform_3, window_bounds = array<i64: 32, 128>}]} {
    %c0 = arith.constant 0 : index
    %c0_0 = arith.constant 0 : index
    %0 = vector.load %arg2[%c0, %c0_0] : memref<32x384xf32, #tpu.memory_space<vmem>>, vector<32x384xf32>
    %1 = arith.truncf %0 : vector<32x384xf32> to vector<32x384xbf16>
    %c0_1 = arith.constant 0 : index
    %c0_2 = arith.constant 0 : index
    %2 = vector.load %arg3[%c0_1, %c0_2] : memref<384x128xbf16, #tpu.memory_space<vmem>>, vector<384x128xbf16>
    %cst = arith.constant dense<0.000000e+00> : vector<32x128xf32>
    %3 = tpu.matmul %1, %2, %cst {dimension_numbers = #tpu.dot_dimension_numbers<[1], [0], [0], [1], [0, 0, 1, 1], [], []>} : vector<32x384xbf16>, vector<384x128xbf16>, vector<32x128xf32> -> vector<32x128xf32>
    %c0_3 = arith.constant 0 : index
    %c0_4 = arith.constant 0 : index
    %4 = vector.load %arg4[%c0_3, %c0_4] : memref<1x128xf32, #tpu.memory_space<vmem>>, vector<1x128xf32>
    %5 = vector.broadcast %4 : vector<1x128xf32> to vector<32x128xf32>
    %6 = arith.addf %3, %5 : vector<32x128xf32>
    %c0_5 = arith.constant 0 : index
    %c0_6 = arith.constant 0 : index
    %7 = vector.load %arg5[%c0_5, %c0_6] : memref<32x128xf32, #tpu.memory_space<vmem>>, vector<32x128xf32>
    tpu.vector_store %arg5[%c0_5, %c0_6], %6 {strides = array<i32>} : memref<32x128xf32, #tpu.memory_space<vmem>>, vector<32x128xf32>,
    return
  }
  func.func @transform_0(%arg0: i32, %arg1: i32) -> (i32, i32) {
    %c0_i32 = arith.constant 0 : i32
    %c0_i32_0 = arith.constant 0 : i32
    return %arg0, %c0_i32 : i32, i32
  }
  func.func @transform_1(%arg0: i32, %arg1: i32) -> (i32, i32) {
    %c0_i32 = arith.constant 0 : i32
    %c0_i32_0 = arith.constant 0 : i32
    return %c0_i32, %arg1 : i32, i32
  }
  func.func @transform_2(%arg0: i32, %arg1: i32) -> (i32, i32) {
    %c0_i32 = arith.constant 0 : i32
    %c0_i32_0 = arith.constant 0 : i32
    return %c0_i32, %arg1 : i32, i32
  }
  func.func @transform_3(%arg0: i32, %arg1: i32) -> (i32, i32) {
    %c0_i32 = arith.constant 0 : i32
    return %arg0, %arg1 : i32, i32
  }
}

</mosaic_0001>

<llo_original>
// kernel: _lambda_.1
$region0: #{_lambda_.1}
  #allocation0 [shape = 'u32[]', space=smem, size = 0x4, offset = 0x4, fixed_abs, tag = 'smem constant byte address 0x4 - core index']
  #allocation1 [shape = 'u32[144,128]{1,0:T(1,128)}', space=vmem, size = 0x12000, scoped, tag = 'internal scratch']
  %s0 = inlined_call_operand.hbm [shape: f32[32,384], index: 0, kind: input, shape index: {}]
  %s1 = inlined_call_operand.hbm [shape: bf16[384,256], index: 1, kind: input, shape index: {}]
  %s2 = inlined_call_operand.vmem [shape: f32[1,256], index: 2, kind: input, shape index: {}]
  %s3 = inlined_call_operand.hbm [shape: f32[32,256], index: 3, kind: output, shape index: {}]
  %s4 = sld [smem:[#allocation0]]
  $region53: #{_lambda_.1} parent=0
    _
  %s6 = ssub.s32 1, %s4
  %s7 = scalar_select 0, %s6, %s4
  $region1: #{_lambda_.1} parent=0
    #allocation2 [shape = 'u8[49152]{0}', space=vmem, size = 0xc000, scoped, tag = 'input window, operand 0, single buffered']
    #allocation3 [shape = 's32[2]{0}', space=sflag, size = 0x8, scoped, tag = 'scoped memory for _lambda_.1']
    #allocation4 [shape = 's32[2]{0}', space=sflag, size = 0x8, scoped, tag = 'scoped memory for _lambda_.1']
    #allocation5 [shape = 'u8[196608]{0}', space=vmem, size = 0x30000, scoped, tag = 'input window, operand 1']
    #allocation6 [shape = 's32[2]{0}', space=sflag, size = 0x8, scoped, tag = 'scoped memory for _lambda_.1']
    #allocation7 [shape = 'u8[32768]{0}', space=vmem, size = 0x8000, scoped, tag = 'output window, operand 0']
    %8 = vsyncpa [#allocation3], 0
    %9 = vsyncpa [#allocation6], 0
    %s10 = scalar_lea.sflag [#allocation6], 1
    %11 = vsyncpa %s10, 0
    %12 = vsyncpa [#allocation4], 0
    %s13 = scalar_lea.sflag [#allocation4], 1
    %14 = vsyncpa %s13, 0
    loop: start=0, step=1, limit=4
    $region2: #{_lambda_.1} parent=1 // loop_pre_header
      _
    $region3: #{_lambda_.1} parent=1 // loop_header
      %s16 = sphi 0, %s20
      %p17 = scmp.ge.s32.totalorder %s16, 4
      %s23 = sphi 0, %s35
      %s24 = sphi 0, %s31
      %s25 = sphi 0, %s23
      %s26 = sphi 0, %s24
      %s27 = sphi 0, %s25
      %s28 = sphi 0, %s26
      %s38 = sphi 0, %s40
      %s41 = sphi 0, %s38
      %s42 = sphi 0, %s41
      %s58 = sphi 0, %s42
      %s64 = sphi 0, %s66
      %s67 = sphi 0, %s64
      %s68 = sphi 0, %s67
      %s84 = sphi 0, %s68
      %s90 = sphi 0, %s92
      %s93 = sphi 0, %s90
      %s94 = sphi 0, %s93
      %s110 = sphi 0, %s94
      %s118 = sphi 0, %s120
      %s121 = sphi 0, %s118
      %s122 = sphi 0, %s121
      %s138 = sphi 0, %s122
    $region4: #{_lambda_.1} parent=1 // loop_header_branch
      %19 = sbr.rel (%p17) target = $region8
    $region5: #{_lambda_.1} parent=1 // loop_body
      %s21 = ssub.s32 %s16, 1
      %s22 = ssub.s32 %s16, 2
      %s29 = sadd.s32 1, %s24
      %p30 = scmp.ge.s32.totalorder %s29, 2
      %s31 = scalar_select %p30, 0, %s29
      %s32 = sadd.s32 1, %s23
      %s33 = scalar_select %p30, %s32, %s23
      %p34 = scmp.ge.s32.totalorder %s33, 1
      %s35 = scalar_select %p34, 0, %s33
      %s36 = ssub.s32 %s23, %s35
      %p37 = scmp.eq.s32.totalorder %s36, 0
      %s39 = sadd.s32 %s38, 1
      %s40 = scalar_select %p37, %s38, %s39
      %p43 = pneg %p37
      %p44 = scmp.eq.s32.totalorder %s16, 1
      %p45 = por %p43, %p44
      %p46 = scmp.ne.s32.totalorder %s38, %s41
      %p47 = scmp.eq.s32.totalorder %s16, 0
      %p48 = por %p46, %p47
      %p49 = scmp.ne.s32.totalorder %s38, %s41
      %p50 = scmp.eq.s32.totalorder %s21, 1
      %p51 = por %p49, %p50
      %p52 = scmp.ne.s32.totalorder %s41, %s42
      %p53 = scmp.eq.s32.totalorder %s21, 0
      %p54 = por %p52, %p53
      %p55 = scmp.ne.s32.totalorder %s41, %s42
      %p56 = scmp.eq.s32.totalorder %s22, 1
      %p57 = por %p55, %p56
      %p59 = scmp.ne.s32.totalorder %s42, %s58
      %p60 = scmp.eq.s32.totalorder %s22, 0
      %p61 = por %p59, %p60
      %s62 = ssub.s32 %s24, %s31
      %p63 = scmp.eq.s32.totalorder %s62, 0
      %s65 = sadd.s32 %s64, 1
      %s66 = scalar_select %p63, %s64, %s65
      %p69 = pneg %p63
      %p70 = scmp.eq.s32.totalorder %s16, 1
      %p71 = por %p69, %p70
      %p72 = scmp.ne.s32.totalorder %s64, %s67
      %p73 = scmp.eq.s32.totalorder %s16, 0
      %p74 = por %p72, %p73
      %p75 = scmp.ne.s32.totalorder %s64, %s67
      %p76 = scmp.eq.s32.totalorder %s21, 1
      %p77 = por %p75, %p76
      %p78 = scmp.ne.s32.totalorder %s67, %s68
      %p79 = scmp.eq.s32.totalorder %s21, 0
      %p80 = por %p78, %p79
      %p81 = scmp.ne.s32.totalorder %s67, %s68
      %p82 = scmp.eq.s32.totalorder %s22, 1
      %p83 = por %p81, %p82
      %p85 = scmp.ne.s32.totalorder %s68, %s84
      %p86 = scmp.eq.s32.totalorder %s22, 0
      %p87 = por %p85, %p86
      %s88 = ssub.s32 %s24, %s31
      %p89 = scmp.eq.s32.totalorder %s88, 0
      %s91 = sadd.s32 %s90, 1
      %s92 = scalar_select %p89, %s90, %s91
      %p95 = pneg %p89
      %p96 = scmp.eq.s32.totalorder %s16, 1
      %p97 = por %p95, %p96
      %p98 = scmp.ne.s32.totalorder %s90, %s93
      %p99 = scmp.eq.s32.totalorder %s16, 0
      %p100 = por %p98, %p99
      %p101 = scmp.ne.s32.totalorder %s90, %s93
      %p102 = scmp.eq.s32.totalorder %s21, 1
      %p103 = por %p101, %p102
      %p104 = scmp.ne.s32.totalorder %s93, %s94
      %p105 = scmp.eq.s32.totalorder %s21, 0
      %p106 = por %p104, %p105
      %p107 = scmp.ne.s32.totalorder %s93, %s94
      %p108 = scmp.eq.s32.totalorder %s22, 1
      %p109 = por %p107, %p108
      %p111 = scmp.ne.s32.totalorder %s94, %s110
      %p112 = scmp.eq.s32.totalorder %s22, 0
      %p113 = por %p111, %p112
      %s114 = ssub.s32 %s23, %s35
      %s115 = ssub.s32 %s24, %s31
      %s116 = sor.u32 %s114, %s115
      %p117 = scmp.eq.s32.totalorder %s116, 0
      %s119 = sadd.s32 %s118, 1
      %s120 = scalar_select %p117, %s118, %s119
      %p123 = pneg %p117
      %p124 = scmp.eq.s32.totalorder %s16, 1
      %p125 = por %p123, %p124
      %p126 = scmp.ne.s32.totalorder %s118, %s121
      %p127 = scmp.eq.s32.totalorder %s16, 0
      %p128 = por %p126, %p127
      %p129 = scmp.ne.s32.totalorder %s118, %s121
      %p130 = scmp.eq.s32.totalorder %s21, 1
      %p131 = por %p129, %p130
      %p132 = scmp.ne.s32.totalorder %s121, %s122
      %p133 = scmp.eq.s32.totalorder %s21, 0
      %p134 = por %p132, %p133
      %p135 = scmp.ne.s32.totalorder %s121, %s122
      %p136 = scmp.eq.s32.totalorder %s22, 1
      %p137 = por %p135, %p136
      %p139 = scmp.ne.s32.totalorder %s122, %s138
      %p140 = scmp.eq.s32.totalorder %s22, 0
      %p141 = por %p139, %p140
      %p142 = scmp.le.s32.totalorder 1, %s16
      %p143 = scmp.lt.s32.totalorder %s16, 3
      %p144 = pnand %p142, %p143
      %p145 = pneg %p144
      // Predicated region
      $region9: #{_lambda_.1} parent=5 // pred_check
        _
      $region10: #{_lambda_.1} parent=5 // pred_check_branch
        %147 = sbr.rel (%p144) target = $region12
      $region11: #{_lambda_.1} parent=5 // pred_region
        %s148 = ssub.s32 %s16, 1
        // Predicated region
        $region13: #{_lambda_.1} parent=11 // pred_check
          %p149 = pneg %p54
        $region14: #{_lambda_.1} parent=11 // pred_check_branch
          %151 = sbr.rel (%p149) target = $region16
        $region15: #{_lambda_.1} parent=11 // pred_region
          %s152 = smul.u32 4, %s25
          %s154 = ssub.s32 1536, 1536
          %155 = vsyncadd [#allocation3], %s154
          %s156 = smul.addr %s152, 3
          %s157 = smul.addr %s156, 128
          %s158 = scalar_lea.hbm %s0, %s157
          %s159 = sshll.u32 [#allocation2], 4
          %s160 = int_to_ptr.vmem [resolvable:$true] %s159
          %165 = dma.hbm_to_vmem [thread:$0]  %s158, 1536, %s160, [#allocation3], 384, 384, 24
        $region16: #{_lambda_.1} parent=11 // pred_fallthru
          _
      $region12: #{_lambda_.1} parent=5 // pred_fallthru
        _
      %p166 = scmp.lt.s32.totalorder %s16, 2
      // Predicated region
      $region17: #{_lambda_.1} parent=5 // pred_check
        %p167 = pneg %p166
      $region18: #{_lambda_.1} parent=5 // pred_check_branch
        %169 = sbr.rel (%p167) target = $region20
      $region19: #{_lambda_.1} parent=5 // pred_region
        // Predicated region
        $region21: #{_lambda_.1} parent=19 // pred_check
          %p170 = pneg %p74
        $region22: #{_lambda_.1} parent=19 // pred_check_branch
          %172 = sbr.rel (%p170) target = $region24
        $region23: #{_lambda_.1} parent=19 // pred_region
          %s173 = sand.u32 %s64, 1
          %s174 = scalar_lea.sflag [#allocation6], %s173
          %s175 = sand.u32 %s64, 1
          %s176 = smul.addr %s175, 192
          %s177 = scalar_lea.vmem [#allocation5], %s176
          %s179 = ssub.s32 3072, 3072
          %180 = vsyncadd %s174, %s179
          %s181 = smul.addr %s24, 64
          %s182 = scalar_lea.hbm %s1, %s181
          %s183 = sshll.u32 %s177, 4
          %s184 = int_to_ptr.vmem [resolvable:$true] %s183
          %189 = dma.hbm_to_vmem [thread:$0]  %s182, 3072, %s184, %s174, 128, 64, 4
        $region24: #{_lambda_.1} parent=19 // pred_fallthru
          _
        // Predicated region
        $region25: #{_lambda_.1} parent=19 // pred_check
          %p190 = pneg %p100
        $region26: #{_lambda_.1} parent=19 // pred_check_branch
          %192 = sbr.rel (%p190) target = $region28
        $region27: #{_lambda_.1} parent=19 // pred_region
          %p193 = scmp.lt.s32.totalorder %s24, 1
          %s194 = scalar_select %p193, %s24, 1
          %s195 = scalar_lea.vmem %s2, %s194
        $region28: #{_lambda_.1} parent=19 // pred_fallthru
          _
      $region20: #{_lambda_.1} parent=5 // pred_fallthru
        _
      %p196 = scmp.le.s32.totalorder 1, %s16
      %p197 = scmp.lt.s32.totalorder %s16, 3
      %p198 = pnand %p196, %p197
      %p199 = pneg %p198
      // Predicated region
      $region29: #{_lambda_.1} parent=5 // pred_check
        _
      $region30: #{_lambda_.1} parent=5 // pred_check_branch
        %201 = sbr.rel (%p198) target = $region32
      $region31: #{_lambda_.1} parent=5 // pred_region
        %s202 = ssub.s32 %s16, 1
        // Predicated region
        $region33: #{_lambda_.1} parent=31 // pred_check
          %p203 = pneg %p54
        $region34: #{_lambda_.1} parent=31 // pred_check_branch
          %205 = sbr.rel (%p203) target = $region36
        $region35: #{_lambda_.1} parent=31 // pred_region
          %206 = dma.done [#allocation3], 1536
        $region36: #{_lambda_.1} parent=31 // pred_fallthru
          _
        %s207 = sand.u32 %s67, 1
        %s208 = scalar_lea.sflag [#allocation6], %s207
        %s209 = sand.u32 %s67, 1
        %s210 = smul.addr %s209, 192
        %s211 = scalar_lea.vmem [#allocation5], %s210
        // Predicated region
        $region37: #{_lambda_.1} parent=31 // pred_check
          %p212 = pneg %p80
        $region38: #{_lambda_.1} parent=31 // pred_check_branch
          %214 = sbr.rel (%p212) target = $region40
        $region39: #{_lambda_.1} parent=31 // pred_region
          %215 = dma.done %s208, 3072
        $region40: #{_lambda_.1} parent=31 // pred_fallthru
          _
        %p216 = pneg %p54
        %p217 = pneg %p51
        %s218 = sand.u32 %s67, 1
        %s219 = scalar_lea.sflag [#allocation6], %s218
        %s220 = sand.u32 %s67, 1
        %s221 = smul.addr %s220, 192
        %s222 = scalar_lea.vmem [#allocation5], %s221
        %p223 = pneg %p80
        %p224 = pneg %p77
        %p225 = scmp.lt.s32.totalorder %s26, 1
        %s226 = scalar_select %p225, %s26, 1
        %s227 = scalar_lea.vmem %s2, %s226
        %p228 = pneg %p106
        %p229 = pneg %p103
        %p230 = pneg %p134
        %p231 = pneg %p131
        %s232 = sand.u32 %s121, 1
        %s233 = scalar_lea.sflag [#allocation4], %s232
        %s234 = sand.u32 %s121, 1
        %s235 = smul.addr %s234, 32
        %s236 = scalar_lea.vmem [#allocation7], %s235
        %s237 = smul.u32 4, %s25
        %p238 = scmp.lt.s32.totalorder %s26, 1
        %s239 = scalar_select %p238, %s26, 1
        %s240 = scalar_lea.vmem %s2, %s239
        %s241 = smul.u32 4, %s25
        %v243 = vld [vmem:[#allocation2] sm:$0xff]
        %v244 = vld [vmem:[#allocation2 + $0x8] sm:$0xff]
        %v245 = vld [vmem:[#allocation2 + $0x10] sm:$0xff]
        %v246 = vld [vmem:[#allocation2 + $0x18] sm:$0xff]
        %v247 = vld [vmem:[#allocation2 + $0x20] sm:$0xff]
        %v248 = vld [vmem:[#allocation2 + $0x28] sm:$0xff]
        %v249 = vld [vmem:[#allocation2 + $0x30] sm:$0xff]
        %v250 = vld [vmem:[#allocation2 + $0x38] sm:$0xff]
        %v251 = vld [vmem:[#allocation2 + $0x40] sm:$0xff]
        %v252 = vld [vmem:[#allocation2 + $0x48] sm:$0xff]
        %v253 = vld [vmem:[#allocation2 + $0x50] sm:$0xff]
        %v254 = vld [vmem:[#allocation2 + $0x58] sm:$0xff]
        %v255 = vpack.c.bf16 %v246, %v243
        %v256 = vpack.c.bf16 %v247, %v244
        %v257 = vpack.c.bf16 %v248, %v245
        %v258 = vpack.c.bf16 %v252, %v249
        %v259 = vpack.c.bf16 %v253, %v250
        %v260 = vpack.c.bf16 %v254, %v251
        %v261 = vld [vmem:[%s211] sm:$0xf]
        %v262 = vld [vmem:[%s211 + $0x4] sm:$0xf]
        %v263 = vld [vmem:[%s211 + $0x8] sm:$0xf]
        %v264 = vld [vmem:[%s211 + $0xc] sm:$0xf]
        %v265 = vld [vmem:[%s211 + $0x10] sm:$0xf]
        %v266 = vld [vmem:[%s211 + $0x14] sm:$0xf]
        %v267 = vld [vmem:[%s211 + $0x18] sm:$0xf]
        %v268 = vld [vmem:[%s211 + $0x1c] sm:$0xf]
        %v269 = vld [vmem:[%s211 + $0x20] sm:$0xf]
        %v270 = vld [vmem:[%s211 + $0x24] sm:$0xf]
        %v271 = vld [vmem:[%s211 + $0x28] sm:$0xf]
        %v272 = vld [vmem:[%s211 + $0x2c] sm:$0xf]
        %v273 = vld [vmem:[%s211 + $0x30] sm:$0xf]
        %v274 = vld [vmem:[%s211 + $0x34] sm:$0xf]
        %v275 = vld [vmem:[%s211 + $0x38] sm:$0xf]
        %v276 = vld [vmem:[%s211 + $0x3c] sm:$0xf]
        %v277 = vld [vmem:[%s211 + $0x40] sm:$0xf]
        %v278 = vld [vmem:[%s211 + $0x44] sm:$0xf]
        %v279 = vld [vmem:[%s211 + $0x48] sm:$0xf]
        %v280 = vld [vmem:[%s211 + $0x4c] sm:$0xf]
        %v281 = vld [vmem:[%s211 + $0x50] sm:$0xf]
        %v282 = vld [vmem:[%s211 + $0x54] sm:$0xf]
        %v283 = vld [vmem:[%s211 + $0x58] sm:$0xf]
        %v284 = vld [vmem:[%s211 + $0x5c] sm:$0xf]
        %v285 = vld [vmem:[%s211 + $0x60] sm:$0xf]
        %v286 = vld [vmem:[%s211 + $0x64] sm:$0xf]
        %v287 = vld [vmem:[%s211 + $0x68] sm:$0xf]
        %v288 = vld [vmem:[%s211 + $0x6c] sm:$0xf]
        %v289 = vld [vmem:[%s211 + $0x70] sm:$0xf]
        %v290 = vld [vmem:[%s211 + $0x74] sm:$0xf]
        %v291 = vld [vmem:[%s211 + $0x78] sm:$0xf]
        %v292 = vld [vmem:[%s211 + $0x7c] sm:$0xf]
        %v293 = vld [vmem:[%s211 + $0x80] sm:$0xf]
        %v294 = vld [vmem:[%s211 + $0x84] sm:$0xf]
        %v295 = vld [vmem:[%s211 + $0x88] sm:$0xf]
        %v296 = vld [vmem:[%s211 + $0x8c] sm:$0xf]
        %v297 = vld [vmem:[%s211 + $0x90] sm:$0xf]
        %v298 = vld [vmem:[%s211 + $0x94] sm:$0xf]
        %v299 = vld [vmem:[%s211 + $0x98] sm:$0xf]
        %v300 = vld [vmem:[%s211 + $0x9c] sm:$0xf]
        %v301 = vld [vmem:[%s211 + $0xa0] sm:$0xf]
        %v302 = vld [vmem:[%s211 + $0xa4] sm:$0xf]
        %v303 = vld [vmem:[%s211 + $0xa8] sm:$0xf]
        %v304 = vld [vmem:[%s211 + $0xac] sm:$0xf]
        %v305 = vld [vmem:[%s211 + $0xb0] sm:$0xf]
        %v306 = vld [vmem:[%s211 + $0xb4] sm:$0xf]
        %v307 = vld [vmem:[%s211 + $0xb8] sm:$0xf]
        %v308 = vld [vmem:[%s211 + $0xbc] sm:$0xf]
        %v309 = vld [vmem:[%s240] sm:$0x1]
        %v311 = vlaneseq
        %v312 = vshrl.u32 %v311, 7
        %v313 = vsub.s32 0, %v312
        %v314 = vrot.slane %v309, %v313
        %v364 = vunpack.c.l.b16 %v261
        %v365 = vunpack.c.l.b16 %v262
        %v366 = vunpack.c.l.b16 %v263
        %v367 = vunpack.c.l.b16 %v264
        %v368 = vunpack.c.l.b16 %v265
        %v369 = vunpack.c.l.b16 %v266
        %v370 = vunpack.c.l.b16 %v267
        %v371 = vunpack.c.l.b16 %v268
        %v372 = vunpack.c.l.b16 %v269
        %v373 = vunpack.c.l.b16 %v270
        %v374 = vunpack.c.l.b16 %v271
        %v375 = vunpack.c.l.b16 %v272
        %v376 = vunpack.c.l.b16 %v273
        %v377 = vunpack.c.l.b16 %v274
        %v378 = vunpack.c.l.b16 %v275
        %v379 = vunpack.c.l.b16 %v276
        %v380 = vunpack.c.l.b16 %v277
        %v381 = vunpack.c.l.b16 %v278
        %v382 = vunpack.c.l.b16 %v279
        %v383 = vunpack.c.l.b16 %v280
        %v384 = vunpack.c.l.b16 %v281
        %v385 = vunpack.c.l.b16 %v282
        %v386 = vunpack.c.l.b16 %v283
        %v387 = vunpack.c.l.b16 %v284
        %v388 = vunpack.c.l.b16 %v285
        %v389 = vunpack.c.l.b16 %v286
        %v390 = vunpack.c.l.b16 %v287
        %v391 = vunpack.c.l.b16 %v288
        %v392 = vunpack.c.l.b16 %v289
        %v393 = vunpack.c.l.b16 %v290
        %v394 = vunpack.c.l.b16 %v291
        %v395 = vunpack.c.l.b16 %v292
        %v396 = vunpack.c.l.b16 %v293
        %v397 = vunpack.c.l.b16 %v294
        %v398 = vunpack.c.l.b16 %v295
        %v399 = vunpack.c.l.b16 %v296
        %v400 = vunpack.c.l.b16 %v297
        %v401 = vunpack.c.l.b16 %v298
        %v402 = vunpack.c.l.b16 %v299
        %v403 = vunpack.c.l.b16 %v300
        %v404 = vunpack.c.l.b16 %v301
        %v405 = vunpack.c.l.b16 %v302
        %v406 = vunpack.c.l.b16 %v303
        %v407 = vunpack.c.l.b16 %v304
        %v408 = vunpack.c.l.b16 %v305
        %v409 = vunpack.c.l.b16 %v306
        %v410 = vunpack.c.l.b16 %v307
        %v411 = vunpack.c.l.b16 %v308
        %v412 = vpack.c.b16 %v365, %v364
        %v413 = vpack.c.b16 %v367, %v366
        %v414 = vpack.c.b16 %v369, %v368
        %v415 = vpack.c.b16 %v371, %v370
        %v416 = vpack.c.b16 %v373, %v372
        %v417 = vpack.c.b16 %v375, %v374
        %v418 = vpack.c.b16 %v377, %v376
        %v419 = vpack.c.b16 %v379, %v378
        %v420 = vpack.c.b16 %v381, %v380
        %v421 = vpack.c.b16 %v383, %v382
        %v422 = vpack.c.b16 %v385, %v384
        %v423 = vpack.c.b16 %v387, %v386
        %v424 = vpack.c.b16 %v389, %v388
        %v425 = vpack.c.b16 %v391, %v390
        %v426 = vpack.c.b16 %v393, %v392
        %v427 = vpack.c.b16 %v395, %v394
        %v428 = vpack.c.b16 %v397, %v396
        %v429 = vpack.c.b16 %v399, %v398
        %v430 = vpack.c.b16 %v401, %v400
        %v431 = vpack.c.b16 %v403, %v402
        %v432 = vpack.c.b16 %v405, %v404
        %v433 = vpack.c.b16 %v407, %v406
        %v434 = vpack.c.b16 %v409, %v408
        %v435 = vpack.c.b16 %v411, %v410
        %460 = vmatprep.subr.bf16.mxu0 0
        %461 = vmatpush1.bf16.msra.mxu0 %v419
        %462 = vmatprep.subr.bf16.mxu0 0
        %463 = vmatpush1.bf16.msra.mxu0 %v418
        %464 = vmatprep.subr.bf16.mxu0 0
        %465 = vmatpush1.bf16.msra.mxu0 %v417
        %466 = vmatprep.subr.bf16.mxu0 0
        %467 = vmatpush1.bf16.msra.mxu0 %v416
        %468 = vmatprep.subr.bf16.mxu0 0
        %469 = vmatpush1.bf16.msra.mxu0 %v415
        %470 = vmatprep.subr.bf16.mxu0 0
        %471 = vmatpush1.bf16.msra.mxu0 %v414
        %472 = vmatprep.subr.bf16.mxu0 0
        %473 = vmatpush1.bf16.msra.mxu0 %v413
        %474 = vmatprep.subr.bf16.mxu0 0
        %475 = vmatpush1.bf16.msra.mxu0 %v412
        %476 = vmatprep.subr.bf16.mxu0 0
        %477 = vmatpush2.bf16.msra.mxu0 %v427
        %478 = vmatprep.subr.bf16.mxu0 0
        %479 = vmatpush2.bf16.msra.mxu0 %v426
        %480 = vmatprep.subr.bf16.mxu0 0
        %481 = vmatpush2.bf16.msra.mxu0 %v425
        %482 = vmatprep.subr.bf16.mxu0 0
        %483 = vmatpush2.bf16.msra.mxu0 %v424
        %484 = vmatprep.subr.bf16.mxu0 0
        %485 = vmatpush2.bf16.msra.mxu0 %v423
        %486 = vmatprep.subr.bf16.mxu0 0
        %487 = vmatpush2.bf16.msra.mxu0 %v422
        %488 = vmatprep.subr.bf16.mxu0 0
        %489 = vmatpush2.bf16.msra.mxu0 %v421
        %490 = vmatprep.subr.bf16.mxu0 0
        %491 = vmatpush2.bf16.msra.mxu0 %v420
        %492 = vmatprep.mubr.bf16.mxu0 %v256
        %493 = vmatmul.mubr.bf16.gmra.mxu0 %v255
        %v494 = vpop.f32.mrf.mxu0
        %v495 = vadd.f32 %v314, %v494
        %v496 = vpop.f32.mrf.mxu0
        %v497 = vpop.f32.mrf.mxu0
        %v498 = vadd.f32 %v314, %v497
        %v499 = vpop.f32.mrf.mxu0
        %500 = vmatprep.mubr.bf16.mxu0 %v259
        %501 = vmatmul.mubr.bf16.gmra.mxu0 %v258
        %v502 = vpop.f32.mrf.mxu0
        %v503 = vadd.f32 %v314, %v502
        %v504 = vpop.f32.mrf.mxu0
        %v505 = vpop.f32.mrf.mxu0
        %v506 = vadd.f32 %v314, %v505
        %v507 = vpop.f32.mrf.mxu0
        %508 = vdwg.mxu0
        %509 = vmatprep.subr.bf16.mxu0 0
        %510 = vmatpush1.bf16.msra.mxu0 %v435
        %511 = vmatprep.subr.bf16.mxu0 0
        %512 = vmatpush1.bf16.msra.mxu0 %v434
        %513 = vmatprep.subr.bf16.mxu0 0
        %514 = vmatpush1.bf16.msra.mxu0 %v433
        %515 = vmatprep.subr.bf16.mxu0 0
        %516 = vmatpush1.bf16.msra.mxu0 %v432
        %517 = vmatprep.subr.bf16.mxu0 0
        %518 = vmatpush1.bf16.msra.mxu0 %v431
        %519 = vmatprep.subr.bf16.mxu0 0
        %520 = vmatpush1.bf16.msra.mxu0 %v430
        %521 = vmatprep.subr.bf16.mxu0 0
        %522 = vmatpush1.bf16.msra.mxu0 %v429
        %523 = vmatprep.subr.bf16.mxu0 0
        %524 = vmatpush1.bf16.msra.mxu0 %v428
        %525 = vmatprep.subr.bf16.mxu0 0
        %526 = vmatpush2.bf16.msra.mxu0 0
        %527 = vmatprep.subr.bf16.mxu0 0
        %528 = vmatpush2.bf16.msra.mxu0 0
        %529 = vmatprep.subr.bf16.mxu0 0
        %530 = vmatpush2.bf16.msra.mxu0 0
        %531 = vmatprep.subr.bf16.mxu0 0
        %532 = vmatpush2.bf16.msra.mxu0 0
        %533 = vmatprep.subr.bf16.mxu0 0
        %534 = vmatpush2.bf16.msra.mxu0 0
        %535 = vmatprep.subr.bf16.mxu0 0
        %536 = vmatpush2.bf16.msra.mxu0 0
        %537 = vmatprep.subr.bf16.mxu0 0
        %538 = vmatpush2.bf16.msra.mxu0 0
        %539 = vmatprep.subr.bf16.mxu0 0
        %540 = vmatpush2.bf16.msra.mxu0 0
        %541 = vmatprep.mubr.bf16.mxu0 0
        %542 = vmatmul.mubr.bf16.gmra.mxu0 %v257
        %v543 = vpop.f32.mrf.mxu0
        %v544 = vadd.f32 %v495, %v543
        %v545 = vpop.f32.mrf.mxu0
        %v546 = vpop.f32.mrf.mxu0
        %v547 = vadd.f32 %v498, %v546
        %v548 = vpop.f32.mrf.mxu0
        %549 = vmatprep.mubr.bf16.mxu0 0
        %550 = vmatmul.mubr.bf16.gmra.mxu0 %v260
        %v551 = vpop.f32.mrf.mxu0
        %v552 = vadd.f32 %v503, %v551
        %v553 = vpop.f32.mrf.mxu0
        %v554 = vpop.f32.mrf.mxu0
        %v555 = vadd.f32 %v506, %v554
        %v556 = vpop.f32.mrf.mxu0
        %557 = vdwg.mxu0
        %558 = vst [vmem:[%s236] sm:$0xff] %v544
        %559 = vst [vmem:[%s236 + $0x8] sm:$0xff] %v547
        %560 = vst [vmem:[%s236 + $0x10] sm:$0xff] %v552
        %561 = vst [vmem:[%s236 + $0x18] sm:$0xff] %v555
        %s562 = sand.u32 %s121, 1
        %s563 = scalar_lea.sflag [#allocation4], %s562
        %s564 = sand.u32 %s121, 1
        %s565 = smul.addr %s564, 32
        %s566 = scalar_lea.vmem [#allocation7], %s565
        // Predicated region
        $region41: #{_lambda_.1} parent=31 // pred_check
          %p567 = pneg %p131
        $region42: #{_lambda_.1} parent=31 // pred_check_branch
          %569 = sbr.rel (%p567) target = $region44
        $region43: #{_lambda_.1} parent=31 // pred_region
          %s570 = smul.u32 4, %s25
          %s572 = ssub.s32 512, 512
          %573 = vsyncadd %s563, %s572
          %s574 = smul.addr %s570, 2
          %s575 = sadd.s32 %s26, %s574
          %s576 = smul.addr %s575, 128
          %s577 = scalar_lea.hbm %s3, %s576
          %s578 = sshll.u32 %s566, 4
          %s579 = int_to_ptr.vmem [resolvable:$true] %s578
          %584 = dma.vmem_to_hbm [thread:$0]  %s579, 512, %s577, %s563, 128, 256, 8
        $region44: #{_lambda_.1} parent=31 // pred_fallthru
          _
      $region32: #{_lambda_.1} parent=5 // pred_fallthru
        _
      %p585 = scmp.le.s32.totalorder 2, %s16
      // Predicated region
      $region45: #{_lambda_.1} parent=5 // pred_check
        %p586 = pneg %p585
      $region46: #{_lambda_.1} parent=5 // pred_check_branch
        %588 = sbr.rel (%p586) target = $region48
      $region47: #{_lambda_.1} parent=5 // pred_region
        %s589 = ssub.s32 %s16, 2
        // Predicated region
        $region49: #{_lambda_.1} parent=47 // pred_check
          %p590 = pneg %p137
        $region50: #{_lambda_.1} parent=47 // pred_check_branch
          %592 = sbr.rel (%p590) target = $region52
        $region51: #{_lambda_.1} parent=47 // pred_region
          %s593 = sand.u32 %s122, 1
          %s594 = scalar_lea.sflag [#allocation4], %s593
          %s595 = sand.u32 %s122, 1
          %s596 = smul.addr %s595, 32
          %s597 = scalar_lea.vmem [#allocation7], %s596
          %598 = dma.done %s594, 512
        $region52: #{_lambda_.1} parent=47 // pred_fallthru
          _
      $region48: #{_lambda_.1} parent=5 // pred_fallthru
        _
    $region6: #{_lambda_.1} parent=1 // loop_footer
      %s20 = sadd.s32 1, %s16
    $region7: #{_lambda_.1} parent=1 // loop_footer_branch
      %15 = sbr.rel target = $region3
    $region8: #{_lambda_.1} parent=1 // loop_exit
      _
    %599 = vsyncpa [#allocation3], 1
    %s600 = scalar_lea.sflag [#allocation3], 1
    %601 = vsyncpa %s600, 1
    %602 = vsyncpa [#allocation6], 1
    %s603 = scalar_lea.sflag [#allocation6], 1
    %604 = vsyncpa %s603, 1
    %605 = vsyncpa [#allocation4], 1
    %s606 = scalar_lea.sflag [#allocation4], 1
    %607 = vsyncpa %s606, 1

</llo_original>
